<compile_context>
chip_gen: v7x
topology: tpu7x:2x2x1
jax: 0.10.0
libtpu: 0.0.40
codegen_flags: <defaults>
</compile_context>

<pallas_src>
import functools

import jax
import jax.numpy as jnp
from jax import lax
from jax.experimental import pallas as pl
from jax.experimental.pallas import tpu as pltpu


def _round_up(v, m):
    return ((v + m - 1) // m) * m


def _triplet_kernel(lab_sref, x_ref, yc_ref, yr_ref, out_ref,
                    xn_ref, tot_ref, cnt_ref, *, margin, n_valid):
    a = pl.program_id(0)
    n_sub = yc_ref.shape[0]     # anchor/positive axis padding (multiple of 8)
    n_lane = yr_ref.shape[1]    # negative axis padding (multiple of 128)

    # --- one-time init: normalize embeddings into scratch, zero accumulators ---
    @pl.when(a == 0)
    def _init():
        x = x_ref[...]                                            # (N_lane, D_pad)
        sq = jnp.sum(x * x, axis=-1, keepdims=True)
        xn_ref[...] = x * lax.rsqrt(jnp.maximum(sq, 1e-24))       # padded rows stay 0
        tot_ref[...] = jnp.zeros_like(tot_ref)
        cnt_ref[...] = jnp.zeros_like(cnt_ref)

    # --- distances of this anchor to all points (row = lanes, col = sublanes) ---
    xa = xn_ref[pl.ds(a, 1), :]                                   # (1, D_pad)
    xn_all = xn_ref[...]                                          # (N_lane, D_pad)
    xn_sub = xn_ref[pl.ds(0, n_sub), :]                           # (N_sub, D_pad)

    g_row = lax.dot_general(xa, xn_all, (((1,), (1,)), ((), ())),
                            preferred_element_type=jnp.float32)   # (1, N_lane)
    g_col = jnp.sum(xn_sub * xa, axis=-1, keepdims=True)          # (N_sub, 1)
    d_row = jnp.maximum(2.0 - 2.0 * g_row, 0.0)                   # D[a, n]
    d_col = jnp.maximum(2.0 - 2.0 * g_col, 0.0)                   # D[a, p]

    # --- positive / negative masks for this anchor ---
    la = lab_sref[a]                                              # scalar int32
    p_ids = lax.broadcasted_iota(jnp.int32, (n_sub, 1), 0)
    n_ids = lax.broadcasted_iota(jnp.int32, (1, n_lane), 1)
    pos = jnp.logical_and(yc_ref[...] == la,
                          jnp.logical_and(p_ids != a, p_ids < n_valid))   # (N_sub, 1)
    neg = jnp.logical_and(yr_ref[...] != la, n_ids < n_valid)             # (1, N_lane)

    # --- semihard mining + loss on one (pos x neg) tile ---
    tm = d_row - d_col                                            # D[a,n] - D[a,p]
    mined = jnp.logical_and(jnp.logical_and(pos, neg),
                            jnp.logical_and(tm > 0.0, tm <= margin))
    contrib = jnp.where(mined, margin - tm, 0.0)                  # = relu(ap - an + margin)
    nz = jnp.logical_and(mined, tm < margin).astype(jnp.float32)  # strictly-positive losses

    tot_ref[...] += jnp.sum(jnp.sum(contrib, axis=1, keepdims=True),
                            axis=0, keepdims=True)
    cnt_ref[...] += jnp.sum(jnp.sum(nz, axis=1, keepdims=True),
                            axis=0, keepdims=True)

    # --- finalize: AvgNonZeroReducer ---
    @pl.when(a == pl.num_programs(0) - 1)
    def _fin():
        t = tot_ref[...]
        c = cnt_ref[...]
        out_ref[...] = jnp.where(c > 0.0, t / jnp.maximum(c, 1.0), 0.0)


def triplet_loss(embeddings, labels, *, margin=0.2):
    """Forward pass of TripletLoss(margin, mining='semihard', distance='l2_squared')."""
    n, d = embeddings.shape
    n_lane = _round_up(n, 128)   # negative / "all points" axis (lanes)
    n_sub = _round_up(n, 8)      # positive axis (sublanes)
    d_pad = _round_up(d, 128)    # feature axis (lanes of the embedding matrix)

    x = jnp.zeros((n_lane, d_pad), jnp.float32).at[:n, :d].set(
        embeddings.astype(jnp.float32))
    lab = labels.astype(jnp.int32)
    yc = jnp.full((n_sub, 1), -1, jnp.int32).at[:n, 0].set(lab)
    yr = jnp.full((1, n_lane), -1, jnp.int32).at[0, :n].set(lab)

    grid_spec = pltpu.PrefetchScalarGridSpec(
        num_scalar_prefetch=1,               # labels -> SMEM, indexed per anchor
        grid=(n,),                           # one real anchor per grid step
        in_specs=[
            pl.BlockSpec((n_lane, d_pad), lambda a, lab_ref: (0, 0)),
            pl.BlockSpec((n_sub, 1), lambda a, lab_ref: (0, 0)),
            pl.BlockSpec((1, n_lane), lambda a, lab_ref: (0, 0)),
        ],
        out_specs=pl.BlockSpec((1, 1), lambda a, lab_ref: (0, 0)),
        scratch_shapes=[
            pltpu.VMEM((n_lane, d_pad), jnp.float32),   # normalized embeddings
            pltpu.VMEM((1, 1), jnp.float32),            # running loss sum
            pltpu.VMEM((1, 1), jnp.float32),            # running nonzero count
        ],
    )

    out = pl.pallas_call(
        functools.partial(_triplet_kernel, margin=float(margin), n_valid=n),
        grid_spec=grid_spec,
        out_shape=jax.ShapeDtypeStruct((1, 1), jnp.float32),
        compiler_params=pltpu.CompilerParams(
            dimension_semantics=("arbitrary",),          # sequential accumulation
            vmem_limit_bytes=32 * 1024 * 1024,           # safe on v5e/v6e/v7x
        ),
    )(lab, x, yc, yr)
    return out[0, 0]


def _triplet_loss_ref(embeddings, labels, margin=0.2):
    """Pure-JAX reference for correctness checking."""
    x = embeddings.astype(jnp.float32)
    xn = x / jnp.maximum(jnp.linalg.norm(x, axis=1, keepdims=True), 1e-12)
    d = jnp.sum((xn[:, None, :] - xn[None, :, :]) ** 2, axis=-1)
    y = labels
    same = y[:, None] == y[None, :]
    eye = jnp.eye(y.shape[0], dtype=bool)
    pos = same & ~eye
    neg = ~same
    ap = d[:, :, None]
    an = d[:, None, :]
    valid = pos[:, :, None] & neg[:, None, :]
    tm = an - ap
    mined = valid & (tm > 0.0) & (tm <= margin)
    per = jnp.where(mined, jnp.maximum(ap - an + margin, 0.0), 0.0)
    cnt = jnp.sum((per > 0.0).astype(jnp.float32))
    return jnp.where(cnt > 0.0, jnp.sum(per) / jnp.maximum(cnt, 1.0), 0.0)


if __name__ == "__main__":
    key = jax.random.PRNGKey(0)
    n, dim = 8, 32
    embeddings = jax.random.normal(key, (n, dim), dtype=jnp.float32)
    labels = jnp.array([0, 0, 1, 1, 2, 2, 3, 3], dtype=jnp.int32)

    loss = triplet_loss(embeddings, labels, margin=0.2)
    loss = jax.block_until_ready(loss)

    ref = _triplet_loss_ref(embeddings, labels, margin=0.2)
    assert jnp.allclose(loss, ref, atol=1e-5, rtol=1e-5), (loss, ref)

    print("KERNEL_OK")
</pallas_src>

<mosaic_0001>
module attributes {stable_mosaic.version = 11 : i64} {
  func.func @_triplet_kernel(%arg0: i32, %arg1: memref<8xi32, #tpu.memory_space<smem>>, %arg2: memref<128x128xf32, #tpu.memory_space<vmem>>, %arg3: memref<8x1xi32, #tpu.memory_space<vmem>>, %arg4: memref<1x128xi32, #tpu.memory_space<vmem>>, %arg5: memref<1x1xf32, #tpu.memory_space<vmem>>, %arg6: memref<128x128xf32, #tpu.memory_space<vmem>>, %arg7: memref<1x1xf32, #tpu.memory_space<vmem>>, %arg8: memref<1x1xf32, #tpu.memory_space<vmem>>) attributes {dimension_semantics = [#tpu.dimension_semantics<arbitrary>], iteration_bounds = array<i64: 8>, scalar_prefetch = 1 : i64, scratch_operands = 3 : i64, tpu.core_type = #tpu.core_type<tc>, window_params = [{pipeline_mode = #tpu.pipeline_mode<synchronous>, transform_indices = @transform_0, window_bounds = array<i64: 128, 128>}, {pipeline_mode = #tpu.pipeline_mode<synchronous>, transform_indices = @transform_1, window_bounds = array<i64: 8, 1>}, {pipeline_mode = #tpu.pipeline_mode<synchronous>, transform_indices = @transform_2, window_bounds = array<i64: 1, 128>}, {pipeline_mode = #tpu.pipeline_mode<synchronous>, transform_indices = @transform_3, window_bounds = array<i64: 1, 1>}]} {
    %c0_i32 = arith.constant 0 : i32
    %0 = arith.cmpi eq, %arg0, %c0_i32 : i32
    %1 = arith.extui %0 : i1 to i32
    %c0_i32_0 = arith.constant 0 : i32
    %2 = arith.cmpi ne, %1, %c0_i32_0 : i32
    scf.if %2 {
      %c0_35 = arith.constant 0 : index
      %c0_36 = arith.constant 0 : index
      %81 = vector.load %arg2[%c0_35, %c0_36] : memref<128x128xf32, #tpu.memory_space<vmem>>, vector<128x128xf32>
      %82 = arith.mulf %81, %81 : vector<128x128xf32>
      %cst_37 = arith.constant dense<0.000000e+00> : vector<128xf32>
      %83 = vector.multi_reduction <add>, %82, %cst_37 [1] : vector<128x128xf32> to vector<128xf32>
      %84 = vector.shape_cast %83 : vector<128xf32> to vector<128x1xf32>
      %cst_38 = arith.constant 1.000000e-24 : f32
      %85 = vector.broadcast %cst_38 : f32 to vector<128x1xf32>
      %86 = arith.maximumf %84, %85 : vector<128x1xf32>
      %87 = math.rsqrt %86 : vector<128x1xf32>
      %88 = vector.broadcast %87 : vector<128x1xf32> to vector<128x128xf32>
      %89 = arith.mulf %81, %88 : vector<128x128xf32>
      %c0_39 = arith.constant 0 : index
      %c0_40 = arith.constant 0 : index
      %90 = vector.load %arg6[%c0_39, %c0_40] : memref<128x128xf32, #tpu.memory_space<vmem>>, vector<128x128xf32>
      tpu.vector_store %arg6[%c0_39, %c0_40], %89 {strides = array<i32>} : memref<128x128xf32, #tpu.memory_space<vmem>>, vector<128x128xf32>,
      %cst_41 = arith.constant 0.000000e+00 : f32
      %91 = vector.broadcast %cst_41 : f32 to vector<1x1xf32>
      %c0_42 = arith.constant 0 : index
      %c0_43 = arith.constant 0 : index
      %92 = vector.load %arg7[%c0_42, %c0_43] : memref<1x1xf32, #tpu.memory_space<vmem>>, vector<1x1xf32>
      tpu.vector_store %arg7[%c0_42, %c0_43], %91 {strides = array<i32>} : memref<1x1xf32, #tpu.memory_space<vmem>>, vector<1x1xf32>,
      %cst_44 = arith.constant 0.000000e+00 : f32
      %93 = vector.broadcast %cst_44 : f32 to vector<1x1xf32>
      %c0_45 = arith.constant 0 : index
      %c0_46 = arith.constant 0 : index
      %94 = vector.load %arg8[%c0_45, %c0_46] : memref<1x1xf32, #tpu.memory_space<vmem>>, vector<1x1xf32>
      tpu.vector_store %arg8[%c0_45, %c0_46], %93 {strides = array<i32>} : memref<1x1xf32, #tpu.memory_space<vmem>>, vector<1x1xf32>,
    } else {
    }
    %3 = arith.index_cast %arg0 : i32 to index
    %c0 = arith.constant 0 : index
    %4 = vector.load %arg6[%3, %c0] : memref<128x128xf32, #tpu.memory_space<vmem>>, vector<1x128xf32>
    %c0_1 = arith.constant 0 : index
    %c0_2 = arith.constant 0 : index
    %5 = vector.load %arg6[%c0_1, %c0_2] : memref<128x128xf32, #tpu.memory_space<vmem>>, vector<128x128xf32>
    %c0_3 = arith.constant 0 : index
    %c0_4 = arith.constant 0 : index
    %6 = vector.load %arg6[%c0_3, %c0_4] : memref<128x128xf32, #tpu.memory_space<vmem>>, vector<8x128xf32>
    %cst = arith.constant dense<0.000000e+00> : vector<1x128xf32>
    %7 = tpu.matmul %4, %5, %cst {dimension_numbers = #tpu.dot_dimension_numbers<[1], [1], [0], [0], [0, 0, 1, 0], [], []>} : vector<1x128xf32>, vector<128x128xf32>, vector<1x128xf32> -> vector<1x128xf32>
    %8 = vector.broadcast %4 : vector<1x128xf32> to vector<8x128xf32>
    %9 = arith.mulf %6, %8 : vector<8x128xf32>
    %cst_5 = arith.constant dense<0.000000e+00> : vector<8xf32>
    %10 = vector.multi_reduction <add>, %9, %cst_5 [1] : vector<8x128xf32> to vector<8xf32>
    %11 = vector.shape_cast %10 : vector<8xf32> to vector<8x1xf32>
    %cst_6 = arith.constant 2.000000e+00 : f32
    %12 = vector.broadcast %cst_6 : f32 to vector<1x128xf32>
    %13 = arith.mulf %12, %7 : vector<1x128xf32>
    %cst_7 = arith.constant 2.000000e+00 : f32
    %14 = vector.broadcast %cst_7 : f32 to vector<1x128xf32>
    %15 = arith.subf %14, %13 : vector<1x128xf32>
    %cst_8 = arith.constant 0.000000e+00 : f32
    %16 = vector.broadcast %cst_8 : f32 to vector<1x128xf32>
    %17 = arith.maximumf %15, %16 : vector<1x128xf32>
    %cst_9 = arith.constant 2.000000e+00 : f32
    %18 = vector.broadcast %cst_9 : f32 to vector<8x1xf32>
    %19 = arith.mulf %18, %11 : vector<8x1xf32>
    %cst_10 = arith.constant 2.000000e+00 : f32
    %20 = vector.broadcast %cst_10 : f32 to vector<8x1xf32>
    %21 = arith.subf %20, %19 : vector<8x1xf32>
    %cst_11 = arith.constant 0.000000e+00 : f32
    %22 = vector.broadcast %cst_11 : f32 to vector<8x1xf32>
    %23 = arith.maximumf %21, %22 : vector<8x1xf32>
    %24 = arith.index_cast %arg0 : i32 to index
    %25 = memref.load %arg1[%24] : memref<8xi32, #tpu.memory_space<smem>>
    %26 = tpu.iota {dimensions = array<i32: 0>} : vector<8x1xi32>
    %27 = tpu.iota {dimensions = array<i32: 1>} : vector<1x128xi32>
    %c0_12 = arith.constant 0 : index
    %c0_13 = arith.constant 0 : index
    %28 = vector.load %arg3[%c0_12, %c0_13] : memref<8x1xi32, #tpu.memory_space<vmem>>, vector<8x1xi32>
    %29 = vector.broadcast %25 : i32 to vector<8x1xi32>
    %30 = arith.cmpi eq, %28, %29 : vector<8x1xi32>
    %31 = vector.broadcast %arg0 : i32 to vector<8x1xi32>
    %32 = arith.cmpi ne, %26, %31 : vector<8x1xi32>
    %c8_i32 = arith.constant 8 : i32
    %33 = vector.broadcast %c8_i32 : i32 to vector<8x1xi32>
    %34 = arith.cmpi slt, %26, %33 : vector<8x1xi32>
    %35 = arith.andi %32, %34 : vector<8x1xi1>
    %36 = arith.andi %30, %35 : vector<8x1xi1>
    %c0_14 = arith.constant 0 : index
    %c0_15 = arith.constant 0 : index
    %37 = vector.load %arg4[%c0_14, %c0_15] : memref<1x128xi32, #tpu.memory_space<vmem>>, vector<1x128xi32>
    %38 = vector.broadcast %25 : i32 to vector<1x128xi32>
    %39 = arith.cmpi ne, %37, %38 : vector<1x128xi32>
    %c8_i32_16 = arith.constant 8 : i32
    %40 = vector.broadcast %c8_i32_16 : i32 to vector<1x128xi32>
    %41 = arith.cmpi slt, %27, %40 : vector<1x128xi32>
    %42 = arith.andi %39, %41 : vector<1x128xi1>
    %43 = vector.broadcast %17 : vector<1x128xf32> to vector<8x128xf32>
    %44 = vector.broadcast %23 : vector<8x1xf32> to vector<8x128xf32>
    %45 = arith.subf %43, %44 : vector<8x128xf32>
    %46 = vector.broadcast %36 : vector<8x1xi1> to vector<8x128xi1>
    %47 = vector.broadcast %42 : vector<1x128xi1> to vector<8x128xi1>
    %48 = arith.andi %46, %47 : vector<8x128xi1>
    %cst_17 = arith.constant 0.000000e+00 : f32
    %49 = vector.broadcast %cst_17 : f32 to vector<8x128xf32>
    %50 = arith.cmpf ogt, %45, %49 : vector<8x128xf32>
    %cst_18 = arith.constant 2.000000e-01 : f32
    %51 = vector.broadcast %cst_18 : f32 to vector<8x128xf32>
    %52 = arith.cmpf ole, %45, %51 : vector<8x128xf32>
    %53 = arith.andi %50, %52 : vector<8x128xi1>
    %54 = arith.andi %48, %53 : vector<8x128xi1>
    %cst_19 = arith.constant 2.000000e-01 : f32
    %55 = vector.broadcast %cst_19 : f32 to vector<8x128xf32>
    %56 = arith.subf %55, %45 : vector<8x128xf32>
    %cst_20 = arith.constant 0.000000e+00 : f32
    %57 = vector.broadcast %cst_20 : f32 to vector<8x128xf32>
    %58 = arith.select %54, %56, %57 : vector<8x128xi1>, vector<8x128xf32>
    %cst_21 = arith.constant 2.000000e-01 : f32
    %59 = vector.broadcast %cst_21 : f32 to vector<8x128xf32>
    %60 = arith.cmpf olt, %45, %59 : vector<8x128xf32>
    %61 = arith.andi %54, %60 : vector<8x128xi1>
    %62 = arith.extui %61 : vector<8x128xi1> to vector<8x128xi32>
    %63 = arith.sitofp %62 : vector<8x128xi32> to vector<8x128xf32>
    %c0_22 = arith.constant 0 : index
    %c0_23 = arith.constant 0 : index
    %64 = vector.load %arg7[%c0_22, %c0_23] : memref<1x1xf32, #tpu.memory_space<vmem>>, vector<1x1xf32>
    %cst_24 = arith.constant dense<0.000000e+00> : vector<8xf32>
    %65 = vector.multi_reduction <add>, %58, %cst_24 [1] : vector<8x128xf32> to vector<8xf32>
    %66 = vector.shape_cast %65 : vector<8xf32> to vector<8x1xf32>
    %cst_25 = arith.constant dense<0.000000e+00> : vector<1xf32>
    %67 = vector.multi_reduction <add>, %66, %cst_25 [0] : vector<8x1xf32> to vector<1xf32>
    %68 = vector.shape_cast %67 : vector<1xf32> to vector<1x1xf32>
    %69 = arith.addf %64, %68 : vector<1x1xf32>
    %c0_26 = arith.constant 0 : index
    %c0_27 = arith.constant 0 : index
    %70 = vector.load %arg7[%c0_26, %c0_27] : memref<1x1xf32, #tpu.memory_space<vmem>>, vector<1x1xf32>
    tpu.vector_store %arg7[%c0_26, %c0_27], %69 {strides = array<i32>} : memref<1x1xf32, #tpu.memory_space<vmem>>, vector<1x1xf32>,
    %c0_28 = arith.constant 0 : index
    %c0_29 = arith.constant 0 : index
    %71 = vector.load %arg8[%c0_28, %c0_29] : memref<1x1xf32, #tpu.memory_space<vmem>>, vector<1x1xf32>
    %cst_30 = arith.constant dense<0.000000e+00> : vector<8xf32>
    %72 = vector.multi_reduction <add>, %63, %cst_30 [1] : vector<8x128xf32> to vector<8xf32>
    %73 = vector.shape_cast %72 : vector<8xf32> to vector<8x1xf32>
    %cst_31 = arith.constant dense<0.000000e+00> : vector<1xf32>
    %74 = vector.multi_reduction <add>, %73, %cst_31 [0] : vector<8x1xf32> to vector<1xf32>
    %75 = vector.shape_cast %74 : vector<1xf32> to vector<1x1xf32>
    %76 = arith.addf %71, %75 : vector<1x1xf32>
    %c0_32 = arith.constant 0 : index
    %c0_33 = arith.constant 0 : index
    %77 = vector.load %arg8[%c0_32, %c0_33] : memref<1x1xf32, #tpu.memory_space<vmem>>, vector<1x1xf32>
    tpu.vector_store %arg8[%c0_32, %c0_33], %76 {strides = array<i32>} : memref<1x1xf32, #tpu.memory_space<vmem>>, vector<1x1xf32>,
    %c7_i32 = arith.constant 7 : i32
    %78 = arith.cmpi eq, %arg0, %c7_i32 : i32
    %79 = arith.extui %78 : i1 to i32
    %c0_i32_34 = arith.constant 0 : i32
    %80 = arith.cmpi ne, %79, %c0_i32_34 : i32
    scf.if %80 {
      %c0_35 = arith.constant 0 : index
      %c0_36 = arith.constant 0 : index
      %81 = vector.load %arg7[%c0_35, %c0_36] : memref<1x1xf32, #tpu.memory_space<vmem>>, vector<1x1xf32>
      %c0_37 = arith.constant 0 : index
      %c0_38 = arith.constant 0 : index
      %82 = vector.load %arg8[%c0_37, %c0_38] : memref<1x1xf32, #tpu.memory_space<vmem>>, vector<1x1xf32>
      %cst_39 = arith.constant 0.000000e+00 : f32
      %83 = vector.broadcast %cst_39 : f32 to vector<1x1xf32>
      %84 = arith.cmpf ogt, %82, %83 : vector<1x1xf32>
      %cst_40 = arith.constant 1.000000e+00 : f32
      %85 = vector.broadcast %cst_40 : f32 to vector<1x1xf32>
      %86 = arith.maximumf %82, %85 : vector<1x1xf32>
      %87 = arith.divf %81, %86 : vector<1x1xf32>
      %cst_41 = arith.constant 0.000000e+00 : f32
      %88 = vector.broadcast %cst_41 : f32 to vector<1x1xf32>
      %89 = arith.select %84, %87, %88 : vector<1x1xi1>, vector<1x1xf32>
      %c0_42 = arith.constant 0 : index
      %c0_43 = arith.constant 0 : index
      %90 = vector.load %arg5[%c0_42, %c0_43] : memref<1x1xf32, #tpu.memory_space<vmem>>, vector<1x1xf32>
      tpu.vector_store %arg5[%c0_42, %c0_43], %89 {strides = array<i32>} : memref<1x1xf32, #tpu.memory_space<vmem>>, vector<1x1xf32>,
    } else {
    }
    return
  }
  func.func @transform_0(%arg0: i32, %arg1: memref<8xi32, #tpu.memory_space<smem>>) -> (i32, i32) {
    %c0_i32 = arith.constant 0 : i32
    %c0_i32_0 = arith.constant 0 : i32
    %c0_i32_1 = arith.constant 0 : i32
    return %c0_i32, %c0_i32_0 : i32, i32
  }
  func.func @transform_1(%arg0: i32, %arg1: memref<8xi32, #tpu.memory_space<smem>>) -> (i32, i32) {
    %c0_i32 = arith.constant 0 : i32
    %c0_i32_0 = arith.constant 0 : i32
    %c0_i32_1 = arith.constant 0 : i32
    return %c0_i32, %c0_i32_0 : i32, i32
  }
  func.func @transform_2(%arg0: i32, %arg1: memref<8xi32, #tpu.memory_space<smem>>) -> (i32, i32) {
    %c0_i32 = arith.constant 0 : i32
    %c0_i32_0 = arith.constant 0 : i32
    %c0_i32_1 = arith.constant 0 : i32
    return %c0_i32, %c0_i32_0 : i32, i32
  }
  func.func @transform_3(%arg0: i32, %arg1: memref<8xi32, #tpu.memory_space<smem>>) -> (i32, i32) {
    %c0_i32 = arith.constant 0 : i32
    %c0_i32_0 = arith.constant 0 : i32
    %c0_i32_1 = arith.constant 0 : i32
    return %c0_i32, %c0_i32_0 : i32, i32
  }
}

</mosaic_0001>

<llo_original>
// kernel: tpu_custom_call.1
$region0: #{tpu_custom_call.1}
  #allocation0 [shape = 'u32[]', space=smem, size = 0x4, offset = 0x4, fixed_abs, tag = 'smem constant byte address 0x4 - core index']
  #allocation1 [shape = 'u32[144,128]{1,0:T(1,128)}', space=vmem, size = 0x12000, scoped, tag = 'internal scratch']
  #allocation2 [shape = 'f32[128,128]{1,0:T(8,128)}', space=vmem, size = 0x10000, scoped, tag = 'scratch operand']
  #allocation3 [shape = 'f32[1,1]{1,0:T(1,128)}', space=vmem, size = 0x200, scoped, tag = 'scratch operand']
  #allocation4 [shape = 'f32[1,1]{1,0:T(1,128)}', space=vmem, size = 0x200, scoped, tag = 'scratch operand']
  #allocation5 [shape = 's32[1]{0}', space=sflag, size = 0x4, scoped, tag = 'scoped memory for tpu_custom_call.1']
  #allocation6 [shape = 'u8[512]{0}', space=smem, size = 0x200, scoped, tag = 'prefetched SMEM operand 0']
  %s0 = inlined_call_operand.vmem [shape: s32[8], index: 0, kind: input, shape index: {}]
  %s1 = inlined_call_operand.hbm [shape: f32[128,128], index: 1, kind: input, shape index: {}]
  %s2 = inlined_call_operand.vmem [shape: s32[8,1], index: 2, kind: input, shape index: {}]
  %s3 = inlined_call_operand.vmem [shape: s32[1,128], index: 3, kind: input, shape index: {}]
  %s4 = inlined_call_operand.hbm [shape: f32[1,1], index: 4, kind: output, shape index: {}]
  %s5 = sld [smem:[#allocation0]]
  $region57: #{tpu_custom_call.1} parent=0
    _
  %s7 = ssub.s32 1, %s5
  %s8 = scalar_select 0, %s7, %s5
  %s9 = sshll.u32 %s0, 4
  %s10 = int_to_ptr.vmem [resolvable:$true] %s9
  %12 = dma.vmem_to_smem %s10, 16, [#allocation6], [#allocation5]
  %13 = dma.done [#allocation5], 16
  %14 = sfence
  $region1: #{tpu_custom_call.1} parent=0
    #allocation7 [shape = 'u8[65536]{0}', space=vmem, size = 0x10000, scoped, tag = 'input window, operand 1, single buffered']
    #allocation8 [shape = 's32[2]{0}', space=sflag, size = 0x8, scoped, tag = 'scoped memory for tpu_custom_call.1']
    #allocation9 [shape = 's32[2]{0}', space=sflag, size = 0x8, scoped, tag = 'scoped memory for tpu_custom_call.1']
    #allocation10 [shape = 'u8[512]{0}', space=vmem, size = 0x400, scoped, tag = 'output window, operand 0, single buffered']
    %15 = vsyncpa [#allocation8], 0
    %16 = vsyncpa [#allocation9], 0
    loop: start=0, step=1, limit=10
    $region2: #{tpu_custom_call.1} parent=1 // loop_pre_header
      _
    $region3: #{tpu_custom_call.1} parent=1 // loop_header
      %s18 = sphi 0, %s22
      %p19 = scmp.ge.s32.totalorder %s18, 10
      %s26 = sphi 0, %s26
      %s28 = sphi 0, %s26
      %s29 = sphi 0, %s28
      %s43 = sphi 0, %s29
      %s47 = sphi 0, %s47
      %s49 = sphi 0, %s47
      %s50 = sphi 0, %s49
      %s64 = sphi 0, %s50
      %s68 = sphi 0, %s68
      %s70 = sphi 0, %s68
      %s71 = sphi 0, %s70
      %s85 = sphi 0, %s71
      %s89 = sphi 0, %s89
      %s91 = sphi 0, %s89
      %s92 = sphi 0, %s91
      %s106 = sphi 0, %s92
    $region4: #{tpu_custom_call.1} parent=1 // loop_header_branch
      %21 = sbr.rel (%p19) target = $region8
    $region5: #{tpu_custom_call.1} parent=1 // loop_body
      %s23 = ssub.s32 %s18, 1
      %s24 = ssub.s32 %s18, 2
      %s25 = sadd.s32 %s18, 1
      %s27 = sadd.s32 %s26, 1
      %p30 = scmp.eq.s32.totalorder %s18, 7
      %p31 = scmp.ne.s32.totalorder %s26, %s28
      %p32 = scmp.eq.s32.totalorder %s18, 0
      %p33 = por %p31, %p32
      %p34 = scmp.ne.s32.totalorder %s26, %s28
      %p35 = scmp.eq.s32.totalorder %s23, 7
      %p36 = por %p34, %p35
      %p37 = scmp.ne.s32.totalorder %s28, %s29
      %p38 = scmp.eq.s32.totalorder %s23, 0
      %p39 = por %p37, %p38
      %p40 = scmp.ne.s32.totalorder %s28, %s29
      %p41 = scmp.eq.s32.totalorder %s24, 7
      %p42 = por %p40, %p41
      %p44 = scmp.ne.s32.totalorder %s29, %s43
      %p45 = scmp.eq.s32.totalorder %s24, 0
      %p46 = por %p44, %p45
      %s48 = sadd.s32 %s47, 1
      %p51 = scmp.eq.s32.totalorder %s18, 7
      %p52 = scmp.ne.s32.totalorder %s47, %s49
      %p53 = scmp.eq.s32.totalorder %s18, 0
      %p54 = por %p52, %p53
      %p55 = scmp.ne.s32.totalorder %s47, %s49
      %p56 = scmp.eq.s32.totalorder %s23, 7
      %p57 = por %p55, %p56
      %p58 = scmp.ne.s32.totalorder %s49, %s50
      %p59 = scmp.eq.s32.totalorder %s23, 0
      %p60 = por %p58, %p59
      %p61 = scmp.ne.s32.totalorder %s49, %s50
      %p62 = scmp.eq.s32.totalorder %s24, 7
      %p63 = por %p61, %p62
      %p65 = scmp.ne.s32.totalorder %s50, %s64
      %p66 = scmp.eq.s32.totalorder %s24, 0
      %p67 = por %p65, %p66
      %s69 = sadd.s32 %s68, 1
      %p72 = scmp.eq.s32.totalorder %s18, 7
      %p73 = scmp.ne.s32.totalorder %s68, %s70
      %p74 = scmp.eq.s32.totalorder %s18, 0
      %p75 = por %p73, %p74
      %p76 = scmp.ne.s32.totalorder %s68, %s70
      %p77 = scmp.eq.s32.totalorder %s23, 7
      %p78 = por %p76, %p77
      %p79 = scmp.ne.s32.totalorder %s70, %s71
      %p80 = scmp.eq.s32.totalorder %s23, 0
      %p81 = por %p79, %p80
      %p82 = scmp.ne.s32.totalorder %s70, %s71
      %p83 = scmp.eq.s32.totalorder %s24, 7
      %p84 = por %p82, %p83
      %p86 = scmp.ne.s32.totalorder %s71, %s85
      %p87 = scmp.eq.s32.totalorder %s24, 0
      %p88 = por %p86, %p87
      %s90 = sadd.s32 %s89, 1
      %p93 = scmp.eq.s32.totalorder %s18, 7
      %p94 = scmp.ne.s32.totalorder %s89, %s91
      %p95 = scmp.eq.s32.totalorder %s18, 0
      %p96 = por %p94, %p95
      %p97 = scmp.ne.s32.totalorder %s89, %s91
      %p98 = scmp.eq.s32.totalorder %s23, 7
      %p99 = por %p97, %p98
      %p100 = scmp.ne.s32.totalorder %s91, %s92
      %p101 = scmp.eq.s32.totalorder %s23, 0
      %p102 = por %p100, %p101
      %p103 = scmp.ne.s32.totalorder %s91, %s92
      %p104 = scmp.eq.s32.totalorder %s24, 7
      %p105 = por %p103, %p104
      %p107 = scmp.ne.s32.totalorder %s92, %s106
      %p108 = scmp.eq.s32.totalorder %s24, 0
      %p109 = por %p107, %p108
      %p110 = scmp.le.s32.totalorder 1, %s18
      %p111 = scmp.lt.s32.totalorder %s18, 9
      %p112 = pnand %p110, %p111
      %p113 = pneg %p112
      // Predicated region
      $region9: #{tpu_custom_call.1} parent=5 // pred_check
        _
      $region10: #{tpu_custom_call.1} parent=5 // pred_check_branch
        %115 = sbr.rel (%p112) target = $region12
      $region11: #{tpu_custom_call.1} parent=5 // pred_region
        %s116 = ssub.s32 %s18, 1
        // Predicated region
        $region13: #{tpu_custom_call.1} parent=11 // pred_check
          %p117 = pneg %p39
        $region14: #{tpu_custom_call.1} parent=11 // pred_check_branch
          %119 = sbr.rel (%p117) target = $region16
        $region15: #{tpu_custom_call.1} parent=11 // pred_region
          %s121 = ssub.s32 2048, 2048
          %122 = vsyncadd [#allocation8], %s121
          %s123 = sshll.u32 [#allocation7], 4
          %s124 = int_to_ptr.vmem [resolvable:$true] %s123
          %129 = dma.hbm_to_vmem [thread:$0]  %s1, 2048, %s124, [#allocation8], 128, 128, 8
        $region16: #{tpu_custom_call.1} parent=11 // pred_fallthru
          _
        // Predicated region
        $region17: #{tpu_custom_call.1} parent=11 // pred_check
          %p130 = pneg %p60
        $region18: #{tpu_custom_call.1} parent=11 // pred_check_branch
          %132 = sbr.rel (%p130) target = $region20
        $region19: #{tpu_custom_call.1} parent=11 // pred_region
          _
        $region20: #{tpu_custom_call.1} parent=11 // pred_fallthru
          _
        // Predicated region
        $region21: #{tpu_custom_call.1} parent=11 // pred_check
          %p133 = pneg %p81
        $region22: #{tpu_custom_call.1} parent=11 // pred_check_branch
          %135 = sbr.rel (%p133) target = $region24
        $region23: #{tpu_custom_call.1} parent=11 // pred_region
          _
        $region24: #{tpu_custom_call.1} parent=11 // pred_fallthru
          _
      $region12: #{tpu_custom_call.1} parent=5 // pred_fallthru
        _
      %p136 = scmp.lt.s32.totalorder %s18, 8
      // Predicated region
      $region25: #{tpu_custom_call.1} parent=5 // pred_check
        %p137 = pneg %p136
      $region26: #{tpu_custom_call.1} parent=5 // pred_check_branch
        %139 = sbr.rel (%p137) target = $region28
      $region27: #{tpu_custom_call.1} parent=5 // pred_region
        _
      $region28: #{tpu_custom_call.1} parent=5 // pred_fallthru
        _
      %p140 = scmp.le.s32.totalorder 1, %s18
      %p141 = scmp.lt.s32.totalorder %s18, 9
      %p142 = pnand %p140, %p141
      %p143 = pneg %p142
      // Predicated region
      $region29: #{tpu_custom_call.1} parent=5 // pred_check
        _
      $region30: #{tpu_custom_call.1} parent=5 // pred_check_branch
        %145 = sbr.rel (%p142) target = $region32
      $region31: #{tpu_custom_call.1} parent=5 // pred_region
        %s146 = ssub.s32 %s18, 1
        // Predicated region
        $region33: #{tpu_custom_call.1} parent=31 // pred_check
          %p147 = pneg %p39
        $region34: #{tpu_custom_call.1} parent=31 // pred_check_branch
          %149 = sbr.rel (%p147) target = $region36
        $region35: #{tpu_custom_call.1} parent=31 // pred_region
          %150 = dma.done [#allocation8], 2048
        $region36: #{tpu_custom_call.1} parent=31 // pred_fallthru
          _
        %p151 = pneg %p39
        %p152 = pneg %p36
        %p153 = pneg %p60
        %p154 = pneg %p57
        %p155 = pneg %p81
        %p156 = pneg %p78
        %p157 = pneg %p102
        %p158 = pneg %p99
        %p159 = scmp.eq.s32.totalorder %s23, 0
        // Predicated region
        $region37: #{tpu_custom_call.1} parent=31 // pred_check
          %p160 = pneg %p159
        $region38: #{tpu_custom_call.1} parent=31 // pred_check_branch
          %162 = sbr.rel (%p160) target = $region40
        $region39: #{tpu_custom_call.1} parent=31 // pred_region
          %v163 = vld [vmem:[#allocation7] sm:$0xff]
          %v164 = vld [vmem:[#allocation7 + $0x8] sm:$0xff]
          %v165 = vld [vmem:[#allocation7 + $0x10] sm:$0xff]
          %v166 = vld [vmem:[#allocation7 + $0x18] sm:$0xff]
          %v167 = vld [vmem:[#allocation7 + $0x20] sm:$0xff]
          %v168 = vld [vmem:[#allocation7 + $0x28] sm:$0xff]
          %v169 = vld [vmem:[#allocation7 + $0x30] sm:$0xff]
          %v170 = vld [vmem:[#allocation7 + $0x38] sm:$0xff]
          %v171 = vld [vmem:[#allocation7 + $0x40] sm:$0xff]
          %v172 = vld [vmem:[#allocation7 + $0x48] sm:$0xff]
          %v173 = vld [vmem:[#allocation7 + $0x50] sm:$0xff]
          %v174 = vld [vmem:[#allocation7 + $0x58] sm:$0xff]
          %v175 = vld [vmem:[#allocation7 + $0x60] sm:$0xff]
          %v176 = vld [vmem:[#allocation7 + $0x68] sm:$0xff]
          %v177 = vld [vmem:[#allocation7 + $0x70] sm:$0xff]
          %v178 = vld [vmem:[#allocation7 + $0x78] sm:$0xff]
          %v179 = vmul.f32 %v163, %v163
          %v180 = vmul.f32 %v164, %v164
          %v181 = vmul.f32 %v165, %v165
          %v182 = vmul.f32 %v166, %v166
          %v183 = vmul.f32 %v167, %v167
          %v184 = vmul.f32 %v168, %v168
          %v185 = vmul.f32 %v169, %v169
          %v186 = vmul.f32 %v170, %v170
          %v187 = vmul.f32 %v171, %v171
          %v188 = vmul.f32 %v172, %v172
          %v189 = vmul.f32 %v173, %v173
          %v190 = vmul.f32 %v174, %v174
          %v191 = vmul.f32 %v175, %v175
          %v192 = vmul.f32 %v176, %v176
          %v193 = vmul.f32 %v177, %v177
          %v194 = vmul.f32 %v178, %v178
          %195 = vadd.xlane.f32.xlu0 %v179
          %v196 = vpop.xlane.xlu0 %195
          %197 = vadd.xlane.f32.xlu0 %v180
          %v198 = vpop.xlane.xlu0 %197
          %199 = vadd.xlane.f32.xlu0 %v181
          %v200 = vpop.xlane.xlu0 %199
          %201 = vadd.xlane.f32.xlu0 %v182
          %v202 = vpop.xlane.xlu0 %201
          %203 = vadd.xlane.f32.xlu0 %v183
          %v204 = vpop.xlane.xlu0 %203
          %205 = vadd.xlane.f32.xlu0 %v184
          %v206 = vpop.xlane.xlu0 %205
          %207 = vadd.xlane.f32.xlu0 %v185
          %v208 = vpop.xlane.xlu0 %207
          %209 = vadd.xlane.f32.xlu0 %v186
          %v210 = vpop.xlane.xlu0 %209
          %211 = vadd.xlane.f32.xlu0 %v187
          %v212 = vpop.xlane.xlu0 %211
          %213 = vadd.xlane.f32.xlu0 %v188
          %v214 = vpop.xlane.xlu0 %213
          %215 = vadd.xlane.f32.xlu0 %v189
          %v216 = vpop.xlane.xlu0 %215
          %217 = vadd.xlane.f32.xlu0 %v190
          %v218 = vpop.xlane.xlu0 %217
          %219 = vadd.xlane.f32.xlu0 %v191
          %v220 = vpop.xlane.xlu0 %219
          %221 = vadd.xlane.f32.xlu0 %v192
          %v222 = vpop.xlane.xlu0 %221
          %223 = vadd.xlane.f32.xlu0 %v193
          %v224 = vpop.xlane.xlu0 %223
          %225 = vadd.xlane.f32.xlu0 %v194
          %v226 = vpop.xlane.xlu0 %225
          %v227 = vmax.f32 %v196, 1e-24
          %v228 = vmax.f32 %v198, 1e-24
          %v229 = vmax.f32 %v200, 1e-24
          %v230 = vmax.f32 %v202, 1e-24
          %v231 = vmax.f32 %v204, 1e-24
          %v232 = vmax.f32 %v206, 1e-24
          %v233 = vmax.f32 %v208, 1e-24
          %v234 = vmax.f32 %v210, 1e-24
          %v235 = vmax.f32 %v212, 1e-24
          %v236 = vmax.f32 %v214, 1e-24
          %v237 = vmax.f32 %v216, 1e-24
          %v238 = vmax.f32 %v218, 1e-24
          %v239 = vmax.f32 %v220, 1e-24
          %v240 = vmax.f32 %v222, 1e-24
          %v241 = vmax.f32 %v224, 1e-24
          %v242 = vmax.f32 %v226, 1e-24
          %v243 = vrsqrt.pop %v227
          %v244 = vrsqrt.pop %v228
          %v245 = vrsqrt.pop %v229
          %v246 = vrsqrt.pop %v230
          %v247 = vrsqrt.pop %v231
          %v248 = vrsqrt.pop %v232
          %v249 = vrsqrt.pop %v233
          %v250 = vrsqrt.pop %v234
          %v251 = vrsqrt.pop %v235
          %v252 = vrsqrt.pop %v236
          %v253 = vrsqrt.pop %v237
          %v254 = vrsqrt.pop %v238
          %v255 = vrsqrt.pop %v239
          %v256 = vrsqrt.pop %v240
          %v257 = vrsqrt.pop %v241
          %v258 = vrsqrt.pop %v242
          %v259 = vmul.f32 %v163, %v243
          %v260 = vmul.f32 %v164, %v244
          %v261 = vmul.f32 %v165, %v245
          %v262 = vmul.f32 %v166, %v246
          %v263 = vmul.f32 %v167, %v247
          %v264 = vmul.f32 %v168, %v248
          %v265 = vmul.f32 %v169, %v249
          %v266 = vmul.f32 %v170, %v250
          %v267 = vmul.f32 %v171, %v251
          %v268 = vmul.f32 %v172, %v252
          %v269 = vmul.f32 %v173, %v253
          %v270 = vmul.f32 %v174, %v254
          %v271 = vmul.f32 %v175, %v255
          %v272 = vmul.f32 %v176, %v256
          %v273 = vmul.f32 %v177, %v257
          %v274 = vmul.f32 %v178, %v258
          %275 = vst [vmem:[#allocation2] sm:$0xff] %v259
          %276 = vst [vmem:[#allocation2 + $0x8] sm:$0xff] %v260
          %277 = vst [vmem:[#allocation2 + $0x10] sm:$0xff] %v261
          %278 = vst [vmem:[#allocation2 + $0x18] sm:$0xff] %v262
          %279 = vst [vmem:[#allocation2 + $0x20] sm:$0xff] %v263
          %280 = vst [vmem:[#allocation2 + $0x28] sm:$0xff] %v264
          %281 = vst [vmem:[#allocation2 + $0x30] sm:$0xff] %v265
          %282 = vst [vmem:[#allocation2 + $0x38] sm:$0xff] %v266
          %283 = vst [vmem:[#allocation2 + $0x40] sm:$0xff] %v267
          %284 = vst [vmem:[#allocation2 + $0x48] sm:$0xff] %v268
          %285 = vst [vmem:[#allocation2 + $0x50] sm:$0xff] %v269
          %286 = vst [vmem:[#allocation2 + $0x58] sm:$0xff] %v270
          %287 = vst [vmem:[#allocation2 + $0x60] sm:$0xff] %v271
          %288 = vst [vmem:[#allocation2 + $0x68] sm:$0xff] %v272
          %289 = vst [vmem:[#allocation2 + $0x70] sm:$0xff] %v273
          %290 = vst [vmem:[#allocation2 + $0x78] sm:$0xff] %v274
          %vm291 = vcmask 0
          %292 = vst.msk [vmem:[#allocation3] sm:$0x1] %vm291, 0.0
          %293 = vst.msk [vmem:[#allocation4] sm:$0x1] %vm291, 0.0
        $region40: #{tpu_custom_call.1} parent=31 // pred_fallthru
          _
        %s294 = scalar_lea.vmem [#allocation2], %s23
        %v295 = vld [vmem:[%s294] sm:$0x1]
        %v296 = vld [vmem:[#allocation2] sm:$0xff]
        %v297 = vld [vmem:[#allocation2 + $0x8] sm:$0xff]
        %v298 = vld [vmem:[#allocation2 + $0x10] sm:$0xff]
        %v299 = vld [vmem:[#allocation2 + $0x18] sm:$0xff]
        %v300 = vld [vmem:[#allocation2 + $0x20] sm:$0xff]
        %v301 = vld [vmem:[#allocation2 + $0x28] sm:$0xff]
        %v302 = vld [vmem:[#allocation2 + $0x30] sm:$0xff]
        %v303 = vld [vmem:[#allocation2 + $0x38] sm:$0xff]
        %v304 = vld [vmem:[#allocation2 + $0x40] sm:$0xff]
        %v305 = vld [vmem:[#allocation2 + $0x48] sm:$0xff]
        %v306 = vld [vmem:[#allocation2 + $0x50] sm:$0xff]
        %v307 = vld [vmem:[#allocation2 + $0x58] sm:$0xff]
        %v308 = vld [vmem:[#allocation2 + $0x60] sm:$0xff]
        %v309 = vld [vmem:[#allocation2 + $0x68] sm:$0xff]
        %v310 = vld [vmem:[#allocation2 + $0x70] sm:$0xff]
        %v311 = vld [vmem:[#allocation2 + $0x78] sm:$0xff]
        %v312 = vld [vmem:[#allocation2] sm:$0xff]
        %313 = vmatprep.subr.mxu0 0.0
        %314 = vmatpush1.xpose.msra.mxu0 %v296
        %315 = vmatprep.subr.mxu0 0.0
        %316 = vmatpush1.xpose.msra.mxu0 %v297
        %317 = vmatprep.subr.mxu0 0.0
        %318 = vmatpush1.xpose.msra.mxu0 %v298
        %319 = vmatprep.subr.mxu0 0.0
        %320 = vmatpush1.xpose.msra.mxu0 %v299
        %321 = vmatprep.subr.mxu0 0.0
        %322 = vmatpush1.xpose.msra.mxu0 %v300
        %323 = vmatprep.subr.mxu0 0.0
        %324 = vmatpush1.xpose.msra.mxu0 %v301
        %325 = vmatprep.subr.mxu0 0.0
        %326 = vmatpush1.xpose.msra.mxu0 %v302
        %327 = vmatprep.subr.mxu0 0.0
        %328 = vmatpush1.xpose.msra.mxu0 %v303
        %329 = vmatprep.subr.mxu0 0.0
        %330 = vmatpush1.xpose.msra.mxu0 %v304
        %331 = vmatprep.subr.mxu0 0.0
        %332 = vmatpush1.xpose.msra.mxu0 %v305
        %333 = vmatprep.subr.mxu0 0.0
        %334 = vmatpush1.xpose.msra.mxu0 %v306
        %335 = vmatprep.subr.mxu0 0.0
        %336 = vmatpush1.xpose.msra.mxu0 %v307
        %337 = vmatprep.subr.mxu0 0.0
        %338 = vmatpush1.xpose.msra.mxu0 %v308
        %339 = vmatprep.subr.mxu0 0.0
        %340 = vmatpush1.xpose.msra.mxu0 %v309
        %341 = vmatprep.subr.mxu0 0.0
        %342 = vmatpush1.xpose.msra.mxu0 %v310
        %343 = vmatprep.subr.mxu0 0.0
        %344 = vmatpush1.xpose.msra.mxu0 %v311
        %345 = vmatprep.subr.mxu0 0.0
        %346 = vmatpush1.xpose.msra.mxu0 0.0
        %347 = vmatprep.subr.mxu0 0.0
        %348 = vmatpush1.xpose.msra.mxu0 0.0
        %349 = vmatprep.subr.mxu0 0.0
        %350 = vmatpush1.xpose.msra.mxu0 0.0
        %351 = vmatprep.subr.mxu0 0.0
        %352 = vmatpush1.xpose.msra.mxu0 0.0
        %353 = vmatprep.subr.mxu0 0.0
        %354 = vmatpush1.xpose.msra.mxu0 0.0
        %355 = vmatprep.subr.mxu0 0.0
        %356 = vmatpush1.xpose.msra.mxu0 0.0
        %357 = vmatprep.subr.mxu0 0.0
        %358 = vmatpush1.xpose.msra.mxu0 0.0
        %359 = vmatprep.subr.mxu0 0.0
        %360 = vmatpush1.xpose.msra.mxu0 0.0
        %361 = vmatprep.subr.mxu0 0.0
        %362 = vmatpush1.xpose.msra.mxu0 0.0
        %363 = vmatprep.subr.mxu0 0.0
        %364 = vmatpush1.xpose.msra.mxu0 0.0
        %365 = vmatprep.subr.mxu0 0.0
        %366 = vmatpush1.xpose.msra.mxu0 0.0
        %367 = vmatprep.subr.mxu0 0.0
        %368 = vmatpush1.xpose.msra.mxu0 0.0
        %369 = vmatprep.subr.mxu0 0.0
        %370 = vmatpush1.xpose.msra.mxu0 0.0
        %371 = vmatprep.subr.mxu0 0.0
        %372 = vmatpush1.xpose.msra.mxu0 0.0
        %373 = vmatprep.subr.mxu0 0.0
        %374 = vmatpush1.xpose.msra.mxu0 0.0
        %375 = vmatprep.subr.mxu0 0.0
        %376 = vmatpush1.xpose.msra.mxu0 0.0
        %377 = vmatprep.mubr.f32.mxu0 0.0
        %378 = vmatmul.mubr.f32.gmra.mrb[0].mxu0 %v295
        %v379 = vpop.f32.mrb[0].mxu0
        %v380 = vadd.f32 0.0, %v379
        %v381 = vpop.f32.mrb[0].mxu0
        %382 = vdwg.mxu0
        %v383 = vlaneseq
        %v384 = vshrl.u32 %v383, 7
        %v385 = vsub.s32 0, %v384
        %v386 = vrot.slane %v295, %v385
        %v387 = vmul.f32 %v312, %v386
        %388 = vadd.xlane.f32.xlu0 %v387
        %v389 = vpop.xlane.xlu0 %388
        %v390 = vmul.f32 %v380, 2.0
        %v391 = vsub.f32 2.0, %v390
        %v392 = vmax.f32 %v391, 0.0
        %v393 = vmul.f32 %v389, 2.0
        %v394 = vsub.f32 2.0, %v393
        %v395 = vmax.f32 %v394, 0.0
        %s396 = sld [smem:[#allocation6 + %s23]]
        %v397 = vlaneseq
        %v398 = vshrl.u32 %v397, 7
        %v399 = vlaneseq
        %v400 = vand.u32 %v399, 127
        %v401 = vld [vmem:[%s2] sm:$0xff]
        %v402 = vstv %s396
        %vm403 = vcmp.eq.s32.totalorder %v401, %v402
        %v404 = vstv %s23
        %vm405 = vcmp.ne.s32.totalorder %v398, %v404
        %vm406 = vcmp.lt.s32.totalorder %v398, 8
        %vm407 = vmand %vm405, %vm406
        %vm408 = vmand %vm403, %vm407
        %v409 = vld [vmem:[%s3] sm:$0x1]
        %vm410 = vcmp.ne.s32.totalorder %v409, %v402
        %vm411 = vcmp.lt.s32.totalorder %v400, 8
        %vm412 = vmand %vm410, %vm411
        %v413 = vlaneseq
        %v414 = vshrl.u32 %v413, 7
        %v415 = vsub.s32 0, %v414
        %v416 = vrot.slane %v392, %v415
        %v417 = vsub.f32 %v416, %v395
        %v418 = vsel %vm408, 1, 0
        %419 = vset.pattern.permute.xlu0 0
        %420 = vperm.xlu0 %419, %v418
        %v421 = vpop.permute.xlu0 %420
        %vm422 = vcmp.eq.s32.totalorder %v421, 1
        %v423 = vsel %vm412, 1, 0
        %v424 = vlaneseq
        %v425 = vshrl.u32 %v424, 7
        %v426 = vsub.s32 0, %v425
        %v427 = vrot.slane %v423, %v426
        %vm428 = vcmp.eq.s32.totalorder %v427, 1
        %vm429 = vmand %vm422, %vm428
        %vm430 = vcmp.gt.f32.partialorder %v417, 0.0
        %vm431 = vcmp.le.f32.partialorder %v417, 0.2
        %vm432 = vmand %vm430, %vm431
        %vm433 = vmand %vm429, %vm432
        %v434 = vsub.f32 0.2, %v417
        %v435 = vsel %vm433, %v434, 0.0
        %vm436 = vcmp.lt.f32.partialorder %v417, 0.2
        %vm437 = vmand %vm433, %vm436
        %v438 = vsel %vm437, 1, 0
        %v439 = vcvt.s32.f32 %v438
        %v440 = vld [vmem:[#allocation3] sm:$0x1]
        %441 = vadd.xlane.f32.xlu0 %v435
        %v442 = vpop.xlane.xlu0 %441
        %v443 = vrot.slane %v442, 4
        %v444 = vadd.f32 %v442, %v443
        %v445 = vrot.slane %v444, 2
        %v446 = vadd.f32 %v444, %v445
        %v447 = vrot.slane %v446, 1
        %v448 = vadd.f32 %v446, %v447
        %v449 = vadd.f32 %v440, %v448
        %vm450 = vcmask 0
        %451 = vst.msk [vmem:[#allocation3] sm:$0x1] %vm450, %v449
        %v452 = vld [vmem:[#allocation4] sm:$0x1]
        %453 = vadd.xlane.f32.xlu0 %v439
        %v454 = vpop.xlane.xlu0 %453
        %v455 = vrot.slane %v454, 4
        %v456 = vadd.f32 %v454, %v455
        %v457 = vrot.slane %v456, 2
        %v458 = vadd.f32 %v456, %v457
        %v459 = vrot.slane %v458, 1
        %v460 = vadd.f32 %v458, %v459
        %v461 = vadd.f32 %v452, %v460
        %462 = vst.msk [vmem:[#allocation4] sm:$0x1] %vm450, %v461
        %p463 = scmp.eq.s32.totalorder %s23, 7
        // Predicated region
        $region41: #{tpu_custom_call.1} parent=31 // pred_check
          %p464 = pneg %p463
        $region42: #{tpu_custom_call.1} parent=31 // pred_check_branch
          %466 = sbr.rel (%p464) target = $region44
        $region43: #{tpu_custom_call.1} parent=31 // pred_region
          %v467 = vld [vmem:[#allocation3] sm:$0x1]
          %v468 = vld [vmem:[#allocation4] sm:$0x1]
          %vm469 = vcmp.gt.f32.partialorder %v468, 0.0
          %v470 = vmax.f32 %v468, 1.0
          %v471 = vrcp.pop %v470
          %v472 = vmul.f32 %v467, %v471
          %v473 = vsel %vm469, %v472, 0.0
          %474 = vst.msk [vmem:[#allocation10] sm:$0x1] %vm450, %v473
        $region44: #{tpu_custom_call.1} parent=31 // pred_fallthru
          _
        // Predicated region
        $region45: #{tpu_custom_call.1} parent=31 // pred_check
          %p475 = pneg %p99
        $region46: #{tpu_custom_call.1} parent=31 // pred_check_branch
          %477 = sbr.rel (%p475) target = $region48
        $region47: #{tpu_custom_call.1} parent=31 // pred_region
          %s479 = ssub.s32 16, 16
          %480 = vsyncadd [#allocation9], %s479
          %s482 = sshll.u32 [#allocation10], 4
          %s483 = int_to_ptr.vmem [resolvable:$true] %s482
          %485 = dma.vmem_to_hbm [thread:$0]  %s483, 16, %s4, [#allocation9]
        $region48: #{tpu_custom_call.1} parent=31 // pred_fallthru
          _
        // Predicated region
        $region49: #{tpu_custom_call.1} parent=31 // pred_check
          %p486 = pneg %p99
        $region50: #{tpu_custom_call.1} parent=31 // pred_check_branch
          %488 = sbr.rel (%p486) target = $region52
        $region51: #{tpu_custom_call.1} parent=31 // pred_region
          %489 = dma.done [#allocation9], 16
        $region52: #{tpu_custom_call.1} parent=31 // pred_fallthru
          _
      $region32: #{tpu_custom_call.1} parent=5 // pred_fallthru
        _
      %p490 = scmp.le.s32.totalorder 2, %s18
      // Predicated region
      $region53: #{tpu_custom_call.1} parent=5 // pred_check
        %p491 = pneg %p490
      $region54: #{tpu_custom_call.1} parent=5 // pred_check_branch
        %493 = sbr.rel (%p491) target = $region56
      $region55: #{tpu_custom_call.1} parent=5 // pred_region
        %s494 = ssub.s32 %s18, 2
      $region56: #{tpu_custom_call.1} parent=5 // pred_fallthru
        _
    $region6: #{tpu_custom_call.1} parent=1 // loop_footer
      %s22 = sadd.s32 1, %s18
    $region7: #{tpu_custom_call.1} parent=1 // loop_footer_branch
      %17 = sbr.rel target = $region3
    $region8: #{tpu_custom_call.1} parent=1 // loop_exit
      _
    %495 = vsyncpa [#allocation8], 1
    %s496 = scalar_lea.sflag [#allocation8], 1
    %497 = vsyncpa %s496, 1
    %498 = vsyncpa [#allocation9], 1
    %s499 = scalar_lea.sflag [#allocation9], 1
    %500 = vsyncpa %s499, 1

</llo_original>
